<compile_context>
chip_gen: v7x
topology: tpu7x:2x2x1
jax: 0.10.0
libtpu: 0.0.40
codegen_flags: <defaults>
</compile_context>

<pallas_src>
import functools

import jax
import jax.numpy as jnp
from jax.experimental import pallas as pl
from jax.experimental.pallas import tpu as pltpu


# ----------------------------------------------------------------------------
# Helpers
# ----------------------------------------------------------------------------
def _round_up(n: int, m: int) -> int:
    return ((n + m - 1) // m) * m


def _vmem_budget_bytes() -> int:
    """Generation-aware scoped-VMEM budget (half of physical, capped)."""
    try:
        cap = int(pltpu.get_tpu_info().vmem_capacity_bytes)
    except Exception:
        cap = 64 * 1024 * 1024  # conservative fallback (v7x-sized)
    return min(cap // 2, 96 * 1024 * 1024)


def _drop_threshold_u8(p: float) -> int:
    # Drop an element iff its uniform uint8 draw is < round(p * 256).
    return int(min(255, max(0, round(p * 256.0))))


def _dropout_bytes(key, shape):
    # Raw uint8 uniform bytes; 4x less HBM traffic than int32 bits.
    return jax.random.bits(key, shape, dtype=jnp.uint8)


def _pick_tm(B: int, cap: int, sub: int) -> int:
    """Batch tile: multiple of `sub` sublanes, bounded padding waste."""
    cap = max(sub, (cap // sub) * sub)
    b_aligned = _round_up(B, sub)
    if b_aligned <= cap:
        return b_aligned          # single batch tile, waste < sub rows
    best_t, best_waste = sub, _round_up(B, sub) - B
    t = cap
    while t >= sub:
        waste = _round_up(B, t) - B
        if waste <= max(sub, B // 8):
            return t
        if waste < best_waste:
            best_t, best_waste = t, waste
        t //= 2
    return best_t


def _pick_tn(C_pad: int, cap: int, fits) -> int | None:
    """Largest multiple of 128 that divides C_pad, <= cap, and fits VMEM."""
    k_total = C_pad // 128
    cands = sorted({128 * k for k in range(1, k_total + 1)
                    if k_total % k == 0 and 128 * k <= cap}, reverse=True)
    for tn in cands:
        if fits(tn):
            return tn
    return None


# ----------------------------------------------------------------------------
# Kernels
# ----------------------------------------------------------------------------
def _linear_kernel(x_ref, w_ref, b_ref, o_ref):
    """Eval path: o = x @ W + b  (dropout is identity under model.eval())."""
    acc = jnp.dot(x_ref[...], w_ref[...], preferred_element_type=jnp.float32)
    o_ref[...] = (acc + b_ref[...].astype(jnp.float32)).astype(o_ref.dtype)


def _dropout_linear_kernel(x_ref, bits_ref, w_ref, b_ref, o_ref, *,
                           drop_threshold: int, inv_keep: float):
    """Training path: o = ((x * keep_mask) @ W) / (1 - p) + b."""
    keep = bits_ref[...].astype(jnp.int32) >= jnp.int32(drop_threshold)
    x = jnp.where(keep, x_ref[...], jnp.zeros_like(x_ref[...]))
    acc = jnp.dot(x, w_ref[...], preferred_element_type=jnp.float32)
    # Scale on the small [tm, tn] result, not the [tm, E] activations.
    o_ref[...] = (acc * jnp.float32(inv_keep)
                  + b_ref[...].astype(jnp.float32)).astype(o_ref.dtype)


# ----------------------------------------------------------------------------
# Parameter preparation (hoisted out of the per-call path)
# ----------------------------------------------------------------------------
def prepare_face_classifier_params(w, b, *, param_dtype=None):
    """Transpose + lane-pad the nn.Linear parameters ONCE.

    w: [num_classes, embedding_dim] (torch nn.Linear layout), b: [num_classes].
    Returns (w_pad [E, C_pad], b_pad [1, C_pad], num_classes) with C_pad a
    multiple of 128 so stores are lane-dense. `param_dtype=jnp.bfloat16` is an
    opt-in, numerics-visible bandwidth optimization for the weight stream.
    """
    C, E = w.shape
    if param_dtype is not None:
        w = w.astype(param_dtype)
        b = b.astype(param_dtype)
    C_pad = _round_up(C, 128)
    w_t = jnp.transpose(w)                       # [E, C]
    if C_pad != C:
        w_t = jnp.pad(w_t, ((0, 0), (0, C_pad - C)))
        b = jnp.pad(b, (0, C_pad - C))
    return w_t, b.reshape(1, C_pad), C


# ----------------------------------------------------------------------------
# Forward
# ----------------------------------------------------------------------------
def face_classifier_forward(x, params, *, training=False, p=0.5, rng_key=None):
    """x: [B, E]; params from prepare_face_classifier_params. Returns [B, C]."""
    w_pad, b_pad, C = params
    B, E = x.shape
    Ew, C_pad = w_pad.shape
    assert E == Ew, "weight/embedding dim mismatch"
    assert 0.0 <= p < 1.0, "dropout p must be in [0, 1)"

    # Homogeneous MXU operands (avoid silent f32 promotion inside jnp.dot).
    if x.dtype != w_pad.dtype:
        x = x.astype(w_pad.dtype)
    out_dtype = x.dtype
    x_bytes = jnp.dtype(x.dtype).itemsize
    w_bytes = jnp.dtype(w_pad.dtype).itemsize
    o_bytes = jnp.dtype(out_dtype).itemsize

    # ---- VMEM budget & generation-aware tile caps ---------------------------
    budget = _vmem_budget_bytes()          # ~64 MiB v5e/v6e, ~32 MiB v7x
    usable = int(budget * 0.8)             # headroom for compiler scratch
    big = budget >= 64 * 1024 * 1024
    tm_cap = 512 if big else 256
    tn_cap = 4096 if big else 2048

    sub = {1: 32, 2: 16}.get(x_bytes, 8)   # sublane packing of x dtype
    if training:
        sub = max(sub, 32)                 # uint8 dropout bytes: (32,128) tiles
    tm = _pick_tm(B, tm_cap, sub)

    def tile_bytes(tm_, tn_):
        per = (tm_ * E * x_bytes + E * tn_ * w_bytes
               + 8 * tn_ * 4 + tm_ * tn_ * o_bytes)
        if training:
            per += tm_ * E                 # uint8 dropout byte tile
        return 2 * per                     # double-buffered pipeline

    tn = _pick_tn(C_pad, tn_cap, lambda tn_: tile_bytes(tm, tn_) <= usable)
    while tn is None and tm > sub:
        tm = max(sub, tm // 2)
        tn = _pick_tn(C_pad, tn_cap, lambda tn_: tile_bytes(tm, tn_) <= usable)
    if tn is None:
        # TODO(synk): add a K-reduction grid axis (tiled E, f32 accumulator).
        raise ValueError(f"embedding_dim={E} too large for un-tiled reduction")

    B_pad = _round_up(B, tm)

    # v7x has 2 TensorCores: guarantee >= 2 grid points on a parallel axis.
    if (B_pad // tm) * (C_pad // tn) == 1:
        if tn >= 256:
            tn //= 2
        elif tm >= 2 * sub and tm % (2 * sub) == 0:
            tm //= 2

    # Class tiles OUTER, batch tiles INNER: weight block index is constant
    # across the inner loop, so the weight matrix is DMA'd from HBM only once.
    grid = (C_pad // tn, B_pad // tm)

    x_p = x if B_pad == B else jnp.pad(x, ((0, B_pad - B), (0, 0)))

    x_spec = pl.BlockSpec((tm, E), lambda j, i: (i, 0))
    w_spec = pl.BlockSpec((E, tn), lambda j, i: (0, j))
    b_spec = pl.BlockSpec((1, tn), lambda j, i: (0, j))
    o_spec = pl.BlockSpec((tm, tn), lambda j, i: (i, j))
    out_shape = jax.ShapeDtypeStruct((B_pad, C_pad), out_dtype)

    bytes_accessed = (B_pad * E * x_bytes + E * C_pad * w_bytes
                      + C_pad * 4 + B_pad * C_pad * o_bytes
                      + (B_pad * E if training else 0))
    cost = pl.CostEstimate(flops=2 * B_pad * E * C_pad, transcendentals=0,
                           bytes_accessed=bytes_accessed)

    compiler_params = pltpu.CompilerParams(
        dimension_semantics=("parallel", "parallel"),
        vmem_limit_bytes=budget,
    )

    if not training:
        out = pl.pallas_call(
            _linear_kernel,
            grid=grid,
            in_specs=[x_spec, w_spec, b_spec],
            out_specs=o_spec,
            out_shape=out_shape,
            compiler_params=compiler_params,
            cost_estimate=cost,
        )(x_p, w_pad, b_pad)
    else:
        if rng_key is None:
            raise ValueError("training=True requires an explicit rng_key "
                             "(reusing a fixed key repeats the dropout mask)")
        bits = _dropout_bytes(rng_key, (B, E))
        bits_p = bits if B_pad == B else jnp.pad(bits, ((0, B_pad - B), (0, 0)))
        bits_spec = pl.BlockSpec((tm, E), lambda j, i: (i, 0))
        kernel = functools.partial(
            _dropout_linear_kernel,
            drop_threshold=_drop_threshold_u8(p),
            inv_keep=1.0 / (1.0 - p),
        )
        out = pl.pallas_call(
            kernel,
            grid=grid,
            in_specs=[x_spec, bits_spec, w_spec, b_spec],
            out_specs=o_spec,
            out_shape=out_shape,
            compiler_params=compiler_params,
            cost_estimate=cost,
        )(x_p, bits_p, w_pad, b_pad)

    return out[:B, :C]


# ----------------------------------------------------------------------------
# Self-test
# ----------------------------------------------------------------------------
if __name__ == "__main__":
    # Module-consistent small shapes: batch=8, embedding_dim=32, num_classes=16
    B, E, C = 8, 32, 16

    key = jax.random.PRNGKey(0)
    kx, kw, kb, kd = jax.random.split(key, 4)

    x = jax.random.normal(kx, (B, E), dtype=jnp.float32)
    # Mimic nn.Linear init: uniform(-1/sqrt(E), 1/sqrt(E)); torch layout [C, E].
    bound = 1.0 / float(E) ** 0.5
    w_torch = jax.random.uniform(kw, (C, E), minval=-bound, maxval=bound,
                                 dtype=jnp.float32)
    b = jax.random.uniform(kb, (C,), minval=-bound, maxval=bound,
                           dtype=jnp.float32)

    # Pad / transpose parameters once (hoisted out of the forward path).
    params = prepare_face_classifier_params(w_torch, b)

    # ---- Eval mode (dropout == identity) ------------------------------------
    out = jax.block_until_ready(face_classifier_forward(x, params,
                                                        training=False))
    ref = x @ w_torch.T + b
    assert out.shape == (B, C)
    assert jnp.allclose(out, ref, atol=1e-4, rtol=1e-4), "eval mismatch"

    # ---- Training mode (inverted dropout, p=0.5) -----------------------------
    p = 0.5
    out_tr = jax.block_until_ready(
        face_classifier_forward(x, params, training=True, p=p, rng_key=kd))
    keep = (_dropout_bytes(kd, (B, E)).astype(jnp.int32)
            >= _drop_threshold_u8(p)).astype(jnp.float32)
    ref_tr = (x * keep) @ w_torch.T * (1.0 / (1.0 - p)) + b
    assert out_tr.shape == (B, C)
    assert jnp.allclose(out_tr, ref_tr, atol=1e-4, rtol=1e-4), "train mismatch"

    print("KERNEL_OK")
</pallas_src>

<mosaic_0001>
module attributes {stable_mosaic.version = 11 : i64} {
  func.func @_linear_kernel(%arg0: i32, %arg1: i32, %arg2: memref<8x32xf32, #tpu.memory_space<vmem>>, %arg3: memref<32x128xf32, #tpu.memory_space<vmem>>, %arg4: memref<1x128xf32, #tpu.memory_space<vmem>>, %arg5: memref<8x128xf32, #tpu.memory_space<vmem>>) attributes {dimension_semantics = [#tpu.dimension_semantics<parallel>, #tpu.dimension_semantics<parallel>], iteration_bounds = array<i64: 1, 1>, scalar_prefetch = 0 : i64, scratch_operands = 0 : i64, tpu.core_type = #tpu.core_type<tc>, window_params = [{transform_indices = @transform_0, window_bounds = array<i64: 8, 32>}, {transform_indices = @transform_1, window_bounds = array<i64: 32, 128>}, {transform_indices = @transform_2, window_bounds = array<i64: 1, 128>}, {transform_indices = @transform_3, window_bounds = array<i64: 8, 128>}]} {
    %c0 = arith.constant 0 : index
    %c0_0 = arith.constant 0 : index
    %0 = vector.load %arg2[%c0, %c0_0] : memref<8x32xf32, #tpu.memory_space<vmem>>, vector<8x32xf32>
    %c0_1 = arith.constant 0 : index
    %c0_2 = arith.constant 0 : index
    %1 = vector.load %arg3[%c0_1, %c0_2] : memref<32x128xf32, #tpu.memory_space<vmem>>, vector<32x128xf32>
    %cst = arith.constant dense<0.000000e+00> : vector<8x128xf32>
    %2 = tpu.matmul %0, %1, %cst {dimension_numbers = #tpu.dot_dimension_numbers<[1], [0], [0], [1], [0, 0, 1, 1], [], []>} : vector<8x32xf32>, vector<32x128xf32>, vector<8x128xf32> -> vector<8x128xf32>
    %c0_3 = arith.constant 0 : index
    %c0_4 = arith.constant 0 : index
    %3 = vector.load %arg4[%c0_3, %c0_4] : memref<1x128xf32, #tpu.memory_space<vmem>>, vector<1x128xf32>
    %4 = vector.broadcast %3 : vector<1x128xf32> to vector<8x128xf32>
    %5 = arith.addf %2, %4 : vector<8x128xf32>
    %c0_5 = arith.constant 0 : index
    %c0_6 = arith.constant 0 : index
    %6 = vector.load %arg5[%c0_5, %c0_6] : memref<8x128xf32, #tpu.memory_space<vmem>>, vector<8x128xf32>
    tpu.vector_store %arg5[%c0_5, %c0_6], %5 {strides = array<i32>} : memref<8x128xf32, #tpu.memory_space<vmem>>, vector<8x128xf32>,
    return
  }
  func.func @transform_0(%arg0: i32, %arg1: i32) -> (i32, i32) {
    %c0_i32 = arith.constant 0 : i32
    %c0_i32_0 = arith.constant 0 : i32
    return %arg1, %c0_i32 : i32, i32
  }
  func.func @transform_1(%arg0: i32, %arg1: i32) -> (i32, i32) {
    %c0_i32 = arith.constant 0 : i32
    %c0_i32_0 = arith.constant 0 : i32
    return %c0_i32, %arg0 : i32, i32
  }
  func.func @transform_2(%arg0: i32, %arg1: i32) -> (i32, i32) {
    %c0_i32 = arith.constant 0 : i32
    %c0_i32_0 = arith.constant 0 : i32
    return %c0_i32, %arg0 : i32, i32
  }
  func.func @transform_3(%arg0: i32, %arg1: i32) -> (i32, i32) {
    %c0_i32 = arith.constant 0 : i32
    return %arg1, %arg0 : i32, i32
  }
}

</mosaic_0001>

<llo_original>
// kernel: tpu_custom_call.1
$region0: #{tpu_custom_call.1}
  #allocation0 [shape = 'u32[]', space=smem, size = 0x4, offset = 0x4, fixed_abs, tag = 'smem constant byte address 0x4 - core index']
  #allocation1 [shape = 'u32[144,128]{1,0:T(1,128)}', space=vmem, size = 0x12000, scoped, tag = 'internal scratch']
  %s0 = inlined_call_operand.hbm [shape: f32[8,32], index: 0, kind: input, shape index: {}]
  %s1 = inlined_call_operand.hbm [shape: f32[32,128], index: 1, kind: input, shape index: {}]
  %s2 = inlined_call_operand.vmem [shape: f32[1,128], index: 2, kind: input, shape index: {}]
  %s3 = inlined_call_operand.hbm [shape: f32[8,128], index: 3, kind: output, shape index: {}]
  %s4 = sld [smem:[#allocation0]]
  $region30: #{tpu_custom_call.1} parent=0
    _
  %s6 = ssub.s32 1, %s4
  %s7 = scalar_select 0, %s6, %s4
  $region1: #{tpu_custom_call.1} parent=0
    #allocation2 [shape = 'u8[4096]{0}', space=vmem, size = 0x1000, scoped, tag = 'input window, operand 0, single buffered']
    #allocation3 [shape = 's32[1]{0}', space=sflag, size = 0x4, scoped, tag = 'scoped memory for tpu_custom_call.1']
    #allocation4 [shape = 's32[1]{0}', space=sflag, size = 0x4, scoped, tag = 'scoped memory for tpu_custom_call.1']
    #allocation5 [shape = 'u8[16384]{0}', space=vmem, size = 0x4000, scoped, tag = 'input window, operand 1, single buffered']
    #allocation6 [shape = 's32[1]{0}', space=sflag, size = 0x4, scoped, tag = 'scoped memory for tpu_custom_call.1']
    #allocation7 [shape = 'u8[4096]{0}', space=vmem, size = 0x1000, scoped, tag = 'output window, operand 0, single buffered']
    %8 = vsyncpa [#allocation3], 0
    %9 = vsyncpa [#allocation6], 0
    %10 = vsyncpa [#allocation4], 0
    // Predicated region
    $region2: #{tpu_custom_call.1} parent=1 // pred_check
      _
    $region3: #{tpu_custom_call.1} parent=1 // pred_check_branch
      %12 = sbr.rel (0) target = $region5
    $region4: #{tpu_custom_call.1} parent=1 // pred_region
      %s14 = ssub.s32 128, 128
      %15 = vsyncadd [#allocation3], %s14
      %s17 = sshll.u32 [#allocation2], 4
      %s18 = int_to_ptr.vmem [resolvable:$true] %s17
      %20 = dma.hbm_to_vmem [thread:$0]  %s0, 128, %s18, [#allocation3]
    $region5: #{tpu_custom_call.1} parent=1 // pred_fallthru
      _
    // Predicated region
    $region6: #{tpu_custom_call.1} parent=1 // pred_check
      _
    $region7: #{tpu_custom_call.1} parent=1 // pred_check_branch
      %22 = sbr.rel (0) target = $region9
    $region8: #{tpu_custom_call.1} parent=1 // pred_region
      %s24 = ssub.s32 512, 512
      %25 = vsyncadd [#allocation6], %s24
      %s26 = sshll.u32 [#allocation5], 4
      %s27 = int_to_ptr.vmem [resolvable:$true] %s26
      %32 = dma.hbm_to_vmem [thread:$0]  %s1, 512, %s27, [#allocation6], 128, 128, 8
    $region9: #{tpu_custom_call.1} parent=1 // pred_fallthru
      _
    // Predicated region
    $region10: #{tpu_custom_call.1} parent=1 // pred_check
      _
    $region11: #{tpu_custom_call.1} parent=1 // pred_check_branch
      %34 = sbr.rel (0) target = $region13
    $region12: #{tpu_custom_call.1} parent=1 // pred_region
      _
    $region13: #{tpu_custom_call.1} parent=1 // pred_fallthru
      _
    // Predicated region
    $region14: #{tpu_custom_call.1} parent=1 // pred_check
      _
    $region15: #{tpu_custom_call.1} parent=1 // pred_check_branch
      %36 = sbr.rel (0) target = $region17
    $region16: #{tpu_custom_call.1} parent=1 // pred_region
      %37 = dma.done [#allocation3], 128
    $region17: #{tpu_custom_call.1} parent=1 // pred_fallthru
      _
    // Predicated region
    $region18: #{tpu_custom_call.1} parent=1 // pred_check
      _
    $region19: #{tpu_custom_call.1} parent=1 // pred_check_branch
      %39 = sbr.rel (0) target = $region21
    $region20: #{tpu_custom_call.1} parent=1 // pred_region
      %40 = dma.done [#allocation6], 512
    $region21: #{tpu_custom_call.1} parent=1 // pred_fallthru
      _
    %v41 = vld [vmem:[#allocation2] sm:$0xff]
    %v42 = vld [vmem:[#allocation5] sm:$0xff]
    %v43 = vld [vmem:[#allocation5 + $0x8] sm:$0xff]
    %v44 = vld [vmem:[#allocation5 + $0x10] sm:$0xff]
    %v45 = vld [vmem:[#allocation5 + $0x18] sm:$0xff]
    %v46 = vld [vmem:[%s2] sm:$0x1]
    %v48 = vlaneseq
    %v49 = vshrl.u32 %v48, 7
    %v50 = vsub.s32 0, %v49
    %v51 = vrot.slane %v46, %v50
    %vm53 = vcmask 261120
    %v55 = vsel %vm53, %v41, 0
    %57 = vmatprep.subr.mxu0 0.0
    %58 = vmatpush1.msra.mxu0 %v42
    %59 = vmatprep.subr.mxu0 0.0
    %60 = vmatpush1.msra.mxu0 %v43
    %61 = vmatprep.subr.mxu0 0.0
    %62 = vmatpush1.msra.mxu0 %v44
    %63 = vmatprep.subr.mxu0 0.0
    %64 = vmatpush1.msra.mxu0 %v45
    %65 = vmatprep.subr.mxu0 0.0
    %66 = vmatpush1.msra.mxu0 0.0
    %67 = vmatprep.subr.mxu0 0.0
    %68 = vmatpush1.msra.mxu0 0.0
    %69 = vmatprep.subr.mxu0 0.0
    %70 = vmatpush1.msra.mxu0 0.0
    %71 = vmatprep.subr.mxu0 0.0
    %72 = vmatpush1.msra.mxu0 0.0
    %73 = vmatprep.subr.mxu0 0.0
    %74 = vmatpush1.msra.mxu0 0.0
    %75 = vmatprep.subr.mxu0 0.0
    %76 = vmatpush1.msra.mxu0 0.0
    %77 = vmatprep.subr.mxu0 0.0
    %78 = vmatpush1.msra.mxu0 0.0
    %79 = vmatprep.subr.mxu0 0.0
    %80 = vmatpush1.msra.mxu0 0.0
    %81 = vmatprep.subr.mxu0 0.0
    %82 = vmatpush1.msra.mxu0 0.0
    %83 = vmatprep.subr.mxu0 0.0
    %84 = vmatpush1.msra.mxu0 0.0
    %85 = vmatprep.subr.mxu0 0.0
    %86 = vmatpush1.msra.mxu0 0.0
    %87 = vmatprep.subr.mxu0 0.0
    %88 = vmatpush1.msra.mxu0 0.0
    %89 = vmatprep.subr.mxu0 0.0
    %90 = vmatpush1.msra.mxu0 0.0
    %91 = vmatprep.subr.mxu0 0.0
    %92 = vmatpush1.msra.mxu0 0.0
    %93 = vmatprep.subr.mxu0 0.0
    %94 = vmatpush1.msra.mxu0 0.0
    %95 = vmatprep.subr.mxu0 0.0
    %96 = vmatpush1.msra.mxu0 0.0
    %97 = vmatprep.subr.mxu0 0.0
    %98 = vmatpush1.msra.mxu0 0.0
    %99 = vmatprep.subr.mxu0 0.0
    %100 = vmatpush1.msra.mxu0 0.0
    %101 = vmatprep.subr.mxu0 0.0
    %102 = vmatpush1.msra.mxu0 0.0
    %103 = vmatprep.subr.mxu0 0.0
    %104 = vmatpush1.msra.mxu0 0.0
    %105 = vmatprep.subr.mxu0 0.0
    %106 = vmatpush1.msra.mxu0 0.0
    %107 = vmatprep.subr.mxu0 0.0
    %108 = vmatpush1.msra.mxu0 0.0
    %109 = vmatprep.subr.mxu0 0.0
    %110 = vmatpush1.msra.mxu0 0.0
    %111 = vmatprep.subr.mxu0 0.0
    %112 = vmatpush1.msra.mxu0 0.0
    %113 = vmatprep.subr.mxu0 0.0
    %114 = vmatpush1.msra.mxu0 0.0
    %115 = vmatprep.subr.mxu0 0.0
    %116 = vmatpush1.msra.mxu0 0.0
    %117 = vmatprep.subr.mxu0 0.0
    %118 = vmatpush1.msra.mxu0 0.0
    %119 = vmatprep.subr.mxu0 0.0
    %120 = vmatpush1.msra.mxu0 0.0
    %121 = vmatprep.mubr.f32.mxu0 0.0
    %122 = vmatmul.mubr.f32.gmra.mrb[0].mxu0 %v55
    %v123 = vpop.f32.mrb[0].mxu0
    %v124 = vadd.f32 %v51, %v123
    %v125 = vpop.f32.mrb[0].mxu0
    %126 = vdwg.mxu0
    %127 = vst [vmem:[#allocation7] sm:$0xff] %v124
    // Predicated region
    $region22: #{tpu_custom_call.1} parent=1 // pred_check
      _
    $region23: #{tpu_custom_call.1} parent=1 // pred_check_branch
      %129 = sbr.rel (0) target = $region25
    $region24: #{tpu_custom_call.1} parent=1 // pred_region
      %s131 = ssub.s32 128, 128
      %132 = vsyncadd [#allocation4], %s131
      %s134 = sshll.u32 [#allocation7], 4
      %s135 = int_to_ptr.vmem [resolvable:$true] %s134
      %137 = dma.vmem_to_hbm [thread:$0]  %s135, 128, %s3, [#allocation4]
    $region25: #{tpu_custom_call.1} parent=1 // pred_fallthru
      _
    // Predicated region
    $region26: #{tpu_custom_call.1} parent=1 // pred_check
      _
    $region27: #{tpu_custom_call.1} parent=1 // pred_check_branch
      %139 = sbr.rel (0) target = $region29
    $region28: #{tpu_custom_call.1} parent=1 // pred_region
      %140 = dma.done [#allocation4], 128
    $region29: #{tpu_custom_call.1} parent=1 // pred_fallthru
      _
    %141 = vsyncpa [#allocation3], 1
    %142 = vsyncpa [#allocation6], 1
    %143 = vsyncpa [#allocation4], 1

</llo_original>
